<compile_context>
chip_gen: v5e
topology: v5e:2x2
jax: 0.10.0
libtpu: 0.0.40
codegen_flags: <defaults>
</compile_context>

<pallas_src>
import functools
import numpy as np
import jax
import jax.numpy as jnp
from jax.experimental import pallas as pl
from jax.experimental.pallas import tpu as pltpu

EPS = 1e-10        # from the PyTorch module
COS_EPS = 1e-8     # torch.nn.functional.cosine_similarity default eps


def _round_up(v, m):
    return ((v + m - 1) // m) * m


# ---------------------------------------------------------------------------
# Pallas kernel 1: per-edge dot product of L2-normalised node features
# (== cosine similarity). Tiled over edges, lane-dense output row.
# ---------------------------------------------------------------------------
def _edge_dot_kernel(a_ref, b_ref, o_ref):
    a = a_ref[...]                       # (tE, F) f32
    b = b_ref[...]
    s = jnp.sum(a * b, axis=-1)          # (tE,) cross-lane reduce (XLU)
    o_ref[...] = s[None, :]              # (1, tE) store


def edge_dot(A, B, *, te=4096):
    """Row-wise sum(A*B, -1).  A, B: (E, F) f32  ->  (E,) f32."""
    E, F = A.shape
    if E <= te:
        # single block == full (padded) array; avoids huge padding for small E
        te = _round_up(max(E, 1), 8)
        E_pad = te
    else:
        E_pad = _round_up(E, te)
    if E_pad != E:
        pad = E_pad - E
        A = jnp.pad(A, ((0, pad), (0, 0)))
        B = jnp.pad(B, ((0, pad), (0, 0)))
    nblk = E_pad // te
    out = pl.pallas_call(
        _edge_dot_kernel,
        out_shape=jax.ShapeDtypeStruct((1, E_pad), jnp.float32),
        grid=(nblk,),
        in_specs=[pl.BlockSpec((te, F), lambda i: (i, 0)),
                  pl.BlockSpec((te, F), lambda i: (i, 0))],
        out_specs=pl.BlockSpec((1, te), lambda i: (0, i)),
        compiler_params=pltpu.CompilerParams(
            dimension_semantics=("parallel",)),
        cost_estimate=pl.CostEstimate(
            flops=2 * E_pad * F,
            transcendentals=0,
            bytes_accessed=2 * E_pad * F * 4 + E_pad * 4),
    )(A, B)
    return out[0, :E]


# ---------------------------------------------------------------------------
# Pallas kernel 2: XW = x @ W, computed ONCE (tiled over rows of x).
# ---------------------------------------------------------------------------
def _xw_kernel(x_ref, w_ref, o_ref):
    o_ref[...] = jnp.dot(x_ref[...], w_ref[...],
                         preferred_element_type=jnp.float32).astype(o_ref.dtype)


def xw_matmul(x_bf, w_bf, *, tm):
    """x_bf: (N_pad, Fin_p) bf16, w_bf: (Fin_p, Fout_p) bf16 -> (N_pad, Fout_p) bf16."""
    N_pad, Fin_p = x_bf.shape
    Fout_p = w_bf.shape[1]
    return pl.pallas_call(
        _xw_kernel,
        out_shape=jax.ShapeDtypeStruct((N_pad, Fout_p), jnp.bfloat16),
        grid=(N_pad // tm,),
        in_specs=[pl.BlockSpec((tm, Fin_p), lambda i: (i, 0)),
                  pl.BlockSpec((Fin_p, Fout_p), lambda i: (0, 0))],
        out_specs=pl.BlockSpec((tm, Fout_p), lambda i: (i, 0)),
        compiler_params=pltpu.CompilerParams(
            dimension_semantics=("parallel",)),
        cost_estimate=pl.CostEstimate(
            flops=2 * N_pad * Fin_p * Fout_p,
            transcendentals=0,
            bytes_accessed=(N_pad * Fin_p + Fin_p * Fout_p
                            + N_pad * Fout_p) * 2),
    )(x_bf, w_bf)


# ---------------------------------------------------------------------------
# Pallas kernel 3: aggregation  out = A_hat @ XW + bias
# grid = (row tiles, contraction tiles). A_hat streamed tile-by-tile; XW kept
# fully resident in VMEM (constant index map); f32 accumulator scratch.
# ---------------------------------------------------------------------------
def _gcn_agg_kernel(a_ref, xw_ref, b_ref, o_ref, acc_ref, *, tk):
    k = pl.program_id(1)

    @pl.when(k == 0)
    def _():
        acc_ref[...] = jnp.zeros_like(acc_ref)

    start = pl.multiple_of(k * tk, 128)
    acc_ref[...] += jnp.dot(a_ref[...], xw_ref[pl.ds(start, tk), :],
                            preferred_element_type=jnp.float32)

    @pl.when(k == pl.num_programs(1) - 1)
    def _():
        o_ref[...] = acc_ref[...] + b_ref[...]


def gcn_aggregate(A_hat, xw, bias2d, *, tm, tk):
    """A_hat: (N_pad, N_pad) bf16, xw: (N_pad, Fout_p) bf16, bias2d: (1, Fout_p) f32."""
    N_pad = A_hat.shape[0]
    Fout_p = xw.shape[1]
    grid = (N_pad // tm, N_pad // tk)
    flops = 2 * N_pad * N_pad * Fout_p
    bytes_accessed = (A_hat.size * 2 + xw.size * 2
                      + N_pad * Fout_p * 4 + Fout_p * 4)
    return pl.pallas_call(
        functools.partial(_gcn_agg_kernel, tk=tk),
        out_shape=jax.ShapeDtypeStruct((N_pad, Fout_p), jnp.float32),
        grid_spec=pltpu.PrefetchScalarGridSpec(
            num_scalar_prefetch=0,
            grid=grid,
            in_specs=[pl.BlockSpec((tm, tk), lambda i, k: (i, k)),      # A_hat tile
                      pl.BlockSpec((N_pad, Fout_p), lambda i, k: (0, 0)),  # XW resident
                      pl.BlockSpec((1, Fout_p), lambda i, k: (0, 0))],     # bias resident
            out_specs=pl.BlockSpec((tm, Fout_p), lambda i, k: (i, 0)),
            scratch_shapes=[pltpu.VMEM((tm, Fout_p), jnp.float32)]),
        compiler_params=pltpu.CompilerParams(
            dimension_semantics=("parallel", "arbitrary"),
            # leaves headroom under v7x's 64 MiB physical VMEM
            vmem_limit_bytes=48 * 1024 * 1024),
        cost_estimate=pl.CostEstimate(flops=int(flops), transcendentals=0,
                                      bytes_accessed=int(bytes_accessed)),
    )(A_hat, xw, bias2d)


def _pick_dense_tiles(N):
    """Pad N decoupled from tile size; tiles big enough to amortize step overhead."""
    if N <= 512:
        n_pad = _round_up(max(N, 1), 128)
        return n_pad, n_pad, n_pad           # single block in each direction
    n_pad = _round_up(N, 512)
    tm = 512
    tk = 1024 if n_pad % 1024 == 0 else 512
    return n_pad, tm, tk


# ---------------------------------------------------------------------------
# MyLayer forward: attention edge re-weighting.  Scatter / gather glue in JAX,
# the per-edge cosine reduction runs in the Pallas kernel above.
# ---------------------------------------------------------------------------
def my_layer_forward(x, edge_index, mask_idx, add_self_loops=True):
    N = x.shape[0]
    # L2-normalise once per node (O(N*F)) -> per-edge cosine is a single dot.
    # NOTE: torch clamps the product of norms; this per-vector clamp differs
    # only for near-zero-norm nodes.
    norms = jnp.sqrt(jnp.sum(x * x, axis=-1, keepdims=True))
    xn = x / jnp.maximum(norms, COS_EPS)

    row, col = edge_index[0], edge_index[1]
    # TODO(synk): gather is materialised in HBM; an in-kernel gather (xn resident
    # in VMEM + per-block edge indices) would remove 2*E*F*4 bytes of traffic.
    A = jnp.take(xn, row, axis=0)
    B = jnp.take(xn, col, axis=0)
    att_score = edge_dot(A, B)                               # Pallas (tiled)

    # static boolean mask (module hyper-parameter) -> concrete index set
    edge_index_m = jnp.take(edge_index, mask_idx, axis=1)
    att_score_m = jnp.take(att_score, mask_idx)
    row_m, col_m = edge_index_m[0], edge_index_m[1]

    # TODO(synk): data-dependent scatter-add kept in plain JAX (no rectangular tiling)
    row_sum = jnp.zeros((N,), jnp.float32).at[col_m].add(att_score_m)
    att_norm = att_score_m / (row_sum[row_m] + EPS)

    if add_self_loops:
        degree = jnp.zeros((N,), jnp.float32).at[col_m].add(
            jnp.ones_like(att_score_m))
        self_weight = 1.0 / (degree + 1.0)
        att_norm = jnp.concatenate([att_norm, self_weight])
        loop_index = jnp.arange(N, dtype=edge_index.dtype)
        loop_index = jnp.stack([loop_index, loop_index], axis=0)
        edge_index_m = jnp.concatenate([edge_index_m, loop_index], axis=1)

    att_norm = jnp.exp(att_norm)
    return edge_index_m, att_norm


# ---------------------------------------------------------------------------
# GCNConv forward (add_self_loops=False).  gcn_norm scatters in JAX glue; the
# dense weighted aggregation runs in the Pallas kernels above.
# ---------------------------------------------------------------------------
def gcn_conv_forward(x, edge_index, edge_weight, W, bias, normalize=True):
    N, Fin = x.shape
    Fout = W.shape[1]
    row, col = edge_index[0], edge_index[1]
    ew = edge_weight.astype(jnp.float32)
    if normalize:
        deg = jnp.zeros((N,), jnp.float32).at[col].add(ew)
        deg_inv_sqrt = jnp.where(deg > 0, deg ** -0.5, 0.0)
        ew = deg_inv_sqrt[row] * ew * deg_inv_sqrt[col]

    N_pad, tm, tk = _pick_dense_tiles(N)
    Fin_p = _round_up(Fin, 128)
    Fout_p = _round_up(Fout, 128)

    # TODO(synk): dense N x N adjacency is O(N^2) HBM; CSR + scalar-prefetch
    # sparse aggregation is the right path for large graphs.
    # Scatter-add in f32 (duplicate-edge safe), single cast to bf16 fused by jit.
    A_hat = jnp.zeros((N_pad, N_pad), jnp.float32).at[col, row].add(ew)
    A_hat = A_hat.astype(jnp.bfloat16)

    x_p = jnp.zeros((N_pad, Fin_p), jnp.bfloat16).at[:N, :Fin].set(
        x.astype(jnp.bfloat16))
    W_p = jnp.zeros((Fin_p, Fout_p), jnp.bfloat16).at[:Fin, :Fout].set(
        W.astype(jnp.bfloat16))
    b_p = jnp.zeros((1, Fout_p), jnp.float32).at[0, :Fout].set(bias)

    xw = xw_matmul(x_p, W_p, tm=tm)                     # Pallas: XW once
    out_p = gcn_aggregate(A_hat, xw, b_p, tm=tm, tk=tk)  # Pallas: A_hat @ XW + b
    return out_p[:N, :Fout]


# ---------------------------------------------------------------------------
# MyModel forward (whole pipeline jitted so bf16 builds / scatters fuse).
# ---------------------------------------------------------------------------
@functools.partial(jax.jit, static_argnames=("normalize",))
def _my_model_forward_core(x, edge_index, mask_idx, W, bias, normalize=True):
    edge_index2, edge_weight = my_layer_forward(x, edge_index, mask_idx,
                                                add_self_loops=True)
    return gcn_conv_forward(x, edge_index2, edge_weight, W, bias,
                            normalize=normalize)


def my_model_forward(x, edge_index, mask, W, bias, normalize=True):
    mask_idx = jnp.asarray(np.flatnonzero(np.asarray(mask)), dtype=jnp.int32)
    return _my_model_forward_core(x, edge_index, mask_idx, W, bias,
                                  normalize=normalize)


# ---------------------------------------------------------------------------
# Pure-JAX reference (same math; matmul inputs rounded to bf16 to mirror the
# kernel's bf16-in / f32-accumulate MXU path).
# ---------------------------------------------------------------------------
def _reference(x, edge_index, mask, W, bias, normalize=True):
    N = x.shape[0]
    row, col = edge_index[0], edge_index[1]
    xn = x / jnp.maximum(jnp.sqrt(jnp.sum(x * x, -1, keepdims=True)), COS_EPS)
    att = jnp.sum(xn[row] * xn[col], axis=-1)
    mask_idx = np.flatnonzero(np.asarray(mask))
    ei = edge_index[:, mask_idx]
    att = att[mask_idx]
    r, c = ei[0], ei[1]
    row_sum = jnp.zeros((N,), jnp.float32).at[c].add(att)
    att_n = att / (row_sum[r] + EPS)
    deg0 = jnp.zeros((N,), jnp.float32).at[c].add(jnp.ones_like(att_n))
    att_n = jnp.concatenate([att_n, 1.0 / (deg0 + 1.0)])
    loop = jnp.arange(N, dtype=ei.dtype)
    ei = jnp.concatenate([ei, jnp.stack([loop, loop])], axis=1)
    w = jnp.exp(att_n)
    r, c = ei[0], ei[1]
    if normalize:
        deg = jnp.zeros((N,), jnp.float32).at[c].add(w)
        dis = jnp.where(deg > 0, deg ** -0.5, 0.0)
        w = dis[r] * w * dis[c]
    A_hat = jnp.zeros((N, N), jnp.float32).at[c, r].add(w)

    bf = lambda t: t.astype(jnp.bfloat16).astype(jnp.float32)
    xw = jnp.dot(bf(x), bf(W), precision="highest")
    out = jnp.dot(bf(A_hat), bf(xw), precision="highest") + bias[None, :]
    return out


if __name__ == "__main__":
    key = jax.random.PRNGKey(0)
    N, Fin, Fout = 16, 32, 8

    k_x, k_ei, k_w, k_b = jax.random.split(key, 4)

    # strictly-positive features -> all cosine scores positive, so the module's
    # row-sum normalisation and exp() stay well conditioned (finite).
    x = jax.random.uniform(k_x, (N, Fin), minval=0.1, maxval=1.0,
                           dtype=jnp.float32)

    # edge set: bidirectional ring (every node has in- AND out-edges) plus a few
    # random extra edges; total E = 2N + 8 = 40
    src = np.arange(N, dtype=np.int32)
    dst = ((src + 1) % N).astype(np.int32)
    ring = np.stack([np.concatenate([src, dst]), np.concatenate([dst, src])])
    extra = np.asarray(jax.random.randint(k_ei, (2, 8), 0, N, dtype=jnp.int32))
    edge_index = jnp.asarray(np.concatenate([ring, extra], axis=1),
                             dtype=jnp.int32)
    E = edge_index.shape[1]

    # static boolean mask (module hyper-parameter): keep the ring (so every
    # source node keeps at least one masked in-edge), drop every other extra
    mask = np.ones((E,), dtype=bool)
    mask[2 * N::2] = False

    # deterministic GCNConv parameters (glorot-style weight, small bias)
    limit = float(np.sqrt(6.0 / (Fin + Fout)))
    W = jax.random.uniform(k_w, (Fin, Fout), minval=-limit, maxval=limit,
                           dtype=jnp.float32)
    bias = 0.01 * jax.random.normal(k_b, (Fout,), dtype=jnp.float32)

    out = my_model_forward(x, edge_index, mask, W, bias, normalize=True)
    out = jax.block_until_ready(out)

    ref = _reference(x, edge_index, mask, W, bias, normalize=True)
    out_np, ref_np = np.asarray(out), np.asarray(ref)

    assert out.shape == (N, Fout)
    assert np.all(np.isfinite(out_np))
    # bf16 matmul inputs / f32 accumulation in the Pallas path -> bf16-level tolerance
    assert np.allclose(out_np, ref_np, atol=2e-2, rtol=2e-2)

    print("KERNEL_OK")
</pallas_src>

<mosaic_0001>
module attributes {stable_mosaic.version = 11 : i64} {
  func.func @_edge_dot_kernel(%arg0: i32, %arg1: memref<40x32xf32, #tpu.memory_space<vmem>>, %arg2: memref<40x32xf32, #tpu.memory_space<vmem>>, %arg3: memref<1x40xf32, #tpu.memory_space<vmem>>) attributes {dimension_semantics = [#tpu.dimension_semantics<parallel>], iteration_bounds = array<i64: 1>, scalar_prefetch = 0 : i64, scratch_operands = 0 : i64, tpu.core_type = #tpu.core_type<tc>, window_params = [{transform_indices = @transform_0, window_bounds = array<i64: 40, 32>}, {transform_indices = @transform_1, window_bounds = array<i64: 40, 32>}, {transform_indices = @transform_2, window_bounds = array<i64: 1, 40>}]} {
    %c0 = arith.constant 0 : index
    %c0_0 = arith.constant 0 : index
    %0 = vector.load %arg1[%c0, %c0_0] : memref<40x32xf32, #tpu.memory_space<vmem>>, vector<40x32xf32>
    %c0_1 = arith.constant 0 : index
    %c0_2 = arith.constant 0 : index
    %1 = vector.load %arg2[%c0_1, %c0_2] : memref<40x32xf32, #tpu.memory_space<vmem>>, vector<40x32xf32>
    %2 = arith.mulf %0, %1 : vector<40x32xf32>
    %cst = arith.constant dense<0.000000e+00> : vector<40xf32>
    %3 = vector.multi_reduction <add>, %2, %cst [1] : vector<40x32xf32> to vector<40xf32>
    %4 = vector.shape_cast %3 : vector<40xf32> to vector<1x40xf32>
    %c0_3 = arith.constant 0 : index
    %c0_4 = arith.constant 0 : index
    %5 = vector.load %arg3[%c0_3, %c0_4] : memref<1x40xf32, #tpu.memory_space<vmem>>, vector<1x40xf32>
    tpu.vector_store %arg3[%c0_3, %c0_4], %4 {strides = array<i32>} : memref<1x40xf32, #tpu.memory_space<vmem>>, vector<1x40xf32>,
    return
  }
  func.func @transform_0(%arg0: i32) -> (i32, i32) {
    %c0_i32 = arith.constant 0 : i32
    %c0_i32_0 = arith.constant 0 : i32
    return %arg0, %c0_i32 : i32, i32
  }
  func.func @transform_1(%arg0: i32) -> (i32, i32) {
    %c0_i32 = arith.constant 0 : i32
    %c0_i32_0 = arith.constant 0 : i32
    return %arg0, %c0_i32 : i32, i32
  }
  func.func @transform_2(%arg0: i32) -> (i32, i32) {
    %c0_i32 = arith.constant 0 : i32
    %c0_i32_0 = arith.constant 0 : i32
    return %c0_i32, %arg0 : i32, i32
  }
}

module attributes {stable_mosaic.version = 11 : i64} {
  func.func @_xw_kernel(%arg0: i32, %arg1: memref<128x128xbf16, #tpu.memory_space<vmem>>, %arg2: memref<128x128xbf16, #tpu.memory_space<vmem>>, %arg3: memref<128x128xbf16, #tpu.memory_space<vmem>>) attributes {dimension_semantics = [#tpu.dimension_semantics<parallel>], iteration_bounds = array<i64: 1>, scalar_prefetch = 0 : i64, scratch_operands = 0 : i64, tpu.core_type = #tpu.core_type<tc>, window_params = [{transform_indices = @transform_0, window_bounds = array<i64: 128, 128>}, {pipeline_mode = #tpu.pipeline_mode<synchronous>, transform_indices = @transform_1, window_bounds = array<i64: 128, 128>}, {transform_indices = @transform_2, window_bounds = array<i64: 128, 128>}]} {
    %c0 = arith.constant 0 : index
    %c0_0 = arith.constant 0 : index
    %0 = vector.load %arg1[%c0, %c0_0] : memref<128x128xbf16, #tpu.memory_space<vmem>>, vector<128x128xbf16>
    %c0_1 = arith.constant 0 : index
    %c0_2 = arith.constant 0 : index
    %1 = vector.load %arg2[%c0_1, %c0_2] : memref<128x128xbf16, #tpu.memory_space<vmem>>, vector<128x128xbf16>
    %cst = arith.constant dense<0.000000e+00> : vector<128x128xf32>
    %2 = tpu.matmul %0, %1, %cst {dimension_numbers = #tpu.dot_dimension_numbers<[1], [0], [0], [1], [0, 0, 1, 1], [], []>} : vector<128x128xbf16>, vector<128x128xbf16>, vector<128x128xf32> -> vector<128x128xf32>
    %3 = arith.truncf %2 : vector<128x128xf32> to vector<128x128xbf16>
    %c0_3 = arith.constant 0 : index
    %c0_4 = arith.constant 0 : index
    %4 = vector.load %arg3[%c0_3, %c0_4] : memref<128x128xbf16, #tpu.memory_space<vmem>>, vector<128x128xbf16>
    tpu.vector_store %arg3[%c0_3, %c0_4], %3 {strides = array<i32>} : memref<128x128xbf16, #tpu.memory_space<vmem>>, vector<128x128xbf16>,
    return
  }
  func.func @transform_0(%arg0: i32) -> (i32, i32) {
    %c0_i32 = arith.constant 0 : i32
    %c0_i32_0 = arith.constant 0 : i32
    return %arg0, %c0_i32 : i32, i32
  }
  func.func @transform_1(%arg0: i32) -> (i32, i32) {
    %c0_i32 = arith.constant 0 : i32
    %c0_i32_0 = arith.constant 0 : i32
    %c0_i32_1 = arith.constant 0 : i32
    return %c0_i32, %c0_i32_0 : i32, i32
  }
  func.func @transform_2(%arg0: i32) -> (i32, i32) {
    %c0_i32 = arith.constant 0 : i32
    %c0_i32_0 = arith.constant 0 : i32
    return %arg0, %c0_i32 : i32, i32
  }
}

module attributes {stable_mosaic.version = 11 : i64} {
  func.func @_gcn_agg_kernel(%arg0: i32, %arg1: i32, %arg2: memref<128x128xbf16, #tpu.memory_space<vmem>>, %arg3: memref<128x128xbf16, #tpu.memory_space<vmem>>, %arg4: memref<1x128xf32, #tpu.memory_space<vmem>>, %arg5: memref<128x128xf32, #tpu.memory_space<vmem>>, %arg6: memref<128x128xf32, #tpu.memory_space<vmem>>) attributes {dimension_semantics = [#tpu.dimension_semantics<parallel>, #tpu.dimension_semantics<arbitrary>], iteration_bounds = array<i64: 1, 1>, scalar_prefetch = 0 : i64, scratch_operands = 1 : i64, tpu.core_type = #tpu.core_type<tc>, window_params = [{transform_indices = @transform_0, window_bounds = array<i64: 128, 128>}, {pipeline_mode = #tpu.pipeline_mode<synchronous>, transform_indices = @transform_1, window_bounds = array<i64: 128, 128>}, {pipeline_mode = #tpu.pipeline_mode<synchronous>, transform_indices = @transform_2, window_bounds = array<i64: 1, 128>}, {transform_indices = @transform_3, window_bounds = array<i64: 128, 128>}]} {
    %c0_i32 = arith.constant 0 : i32
    %0 = arith.cmpi eq, %arg1, %c0_i32 : i32
    %1 = arith.extui %0 : i1 to i32
    %c0_i32_0 = arith.constant 0 : i32
    %2 = arith.cmpi ne, %1, %c0_i32_0 : i32
    scf.if %2 {
      %cst_9 = arith.constant 0.000000e+00 : f32
      %15 = vector.broadcast %cst_9 : f32 to vector<128x128xf32>
      %c0_10 = arith.constant 0 : index
      %c0_11 = arith.constant 0 : index
      %16 = vector.load %arg6[%c0_10, %c0_11] : memref<128x128xf32, #tpu.memory_space<vmem>>, vector<128x128xf32>
      tpu.vector_store %arg6[%c0_10, %c0_11], %15 {strides = array<i32>} : memref<128x128xf32, #tpu.memory_space<vmem>>, vector<128x128xf32>,
    } else {
    }
    %c128_i32 = arith.constant 128 : i32
    %3 = arith.muli %arg1, %c128_i32 : i32
    %4 = tpu.assume_multiple %3, 128 : i32
    %c0 = arith.constant 0 : index
    %c0_1 = arith.constant 0 : index
    %5 = vector.load %arg6[%c0, %c0_1] : memref<128x128xf32, #tpu.memory_space<vmem>>, vector<128x128xf32>
    %c0_2 = arith.constant 0 : index
    %c0_3 = arith.constant 0 : index
    %6 = vector.load %arg2[%c0_2, %c0_3] : memref<128x128xbf16, #tpu.memory_space<vmem>>, vector<128x128xbf16>
    %7 = arith.index_cast %4 : i32 to index
    %c0_4 = arith.constant 0 : index
    %8 = vector.load %arg3[%7, %c0_4] : memref<128x128xbf16, #tpu.memory_space<vmem>>, vector<128x128xbf16>
    %cst = arith.constant dense<0.000000e+00> : vector<128x128xf32>
    %9 = tpu.matmul %6, %8, %cst {dimension_numbers = #tpu.dot_dimension_numbers<[1], [0], [0], [1], [0, 0, 1, 1], [], []>} : vector<128x128xbf16>, vector<128x128xbf16>, vector<128x128xf32> -> vector<128x128xf32>
    %10 = arith.addf %5, %9 : vector<128x128xf32>
    %c0_5 = arith.constant 0 : index
    %c0_6 = arith.constant 0 : index
    %11 = vector.load %arg6[%c0_5, %c0_6] : memref<128x128xf32, #tpu.memory_space<vmem>>, vector<128x128xf32>
    tpu.vector_store %arg6[%c0_5, %c0_6], %10 {strides = array<i32>} : memref<128x128xf32, #tpu.memory_space<vmem>>, vector<128x128xf32>,
    %c0_i32_7 = arith.constant 0 : i32
    %12 = arith.cmpi eq, %arg1, %c0_i32_7 : i32
    %13 = arith.extui %12 : i1 to i32
    %c0_i32_8 = arith.constant 0 : i32
    %14 = arith.cmpi ne, %13, %c0_i32_8 : i32
    scf.if %14 {
      %c0_9 = arith.constant 0 : index
      %c0_10 = arith.constant 0 : index
      %15 = vector.load %arg6[%c0_9, %c0_10] : memref<128x128xf32, #tpu.memory_space<vmem>>, vector<128x128xf32>
      %c0_11 = arith.constant 0 : index
      %c0_12 = arith.constant 0 : index
      %16 = vector.load %arg4[%c0_11, %c0_12] : memref<1x128xf32, #tpu.memory_space<vmem>>, vector<1x128xf32>
      %17 = vector.broadcast %16 : vector<1x128xf32> to vector<128x128xf32>
      %18 = arith.addf %15, %17 : vector<128x128xf32>
      %c0_13 = arith.constant 0 : index
      %c0_14 = arith.constant 0 : index
      %19 = vector.load %arg5[%c0_13, %c0_14] : memref<128x128xf32, #tpu.memory_space<vmem>>, vector<128x128xf32>
      tpu.vector_store %arg5[%c0_13, %c0_14], %18 {strides = array<i32>} : memref<128x128xf32, #tpu.memory_space<vmem>>, vector<128x128xf32>,
    } else {
    }
    return
  }
  func.func @transform_0(%arg0: i32, %arg1: i32) -> (i32, i32) {
    %c0_i32 = arith.constant 0 : i32
    return %arg0, %arg1 : i32, i32
  }
  func.func @transform_1(%arg0: i32, %arg1: i32) -> (i32, i32) {
    %c0_i32 = arith.constant 0 : i32
    %c0_i32_0 = arith.constant 0 : i32
    %c0_i32_1 = arith.constant 0 : i32
    return %c0_i32, %c0_i32_0 : i32, i32
  }
  func.func @transform_2(%arg0: i32, %arg1: i32) -> (i32, i32) {
    %c0_i32 = arith.constant 0 : i32
    %c0_i32_0 = arith.constant 0 : i32
    %c0_i32_1 = arith.constant 0 : i32
    return %c0_i32, %c0_i32_0 : i32, i32
  }
  func.func @transform_3(%arg0: i32, %arg1: i32) -> (i32, i32) {
    %c0_i32 = arith.constant 0 : i32
    %c0_i32_0 = arith.constant 0 : i32
    return %arg0, %c0_i32 : i32, i32
  }
}

</mosaic_0001>

<llo_original>
// kernel: _my_model_forward_core.3
$region0: #{_my_model_forward_core.3}
  #allocation0 [shape = 'u32[]', space=smem, size = 0x4, offset = 0x4, fixed_abs, tag = 'smem constant byte address 0x4 - core index']
  #allocation1 [shape = 'u32[72,128]{1,0:T(1,128)}', space=vmem, size = 0x9000, scoped, tag = 'internal scratch']
  %s0 = inlined_call_operand.vmem [shape: f32[40,32], index: 0, kind: input, shape index: {}]
  %s1 = inlined_call_operand.vmem [shape: f32[40,32], index: 1, kind: input, shape index: {}]
  %s2 = inlined_call_operand.vmem [shape: f32[1,40], index: 2, kind: output, shape index: {}]
  %s3 = sld [smem:[#allocation0]]
  $region18: #{_my_model_forward_core.3} parent=0
    _
  %s5 = ssub.s32 1, %s3
  %s6 = scalar_select 0, %s5, %s3
  // Predicated region
  $region2: #{_my_model_forward_core.3} parent=0 // pred_check
    _
  $region3: #{_my_model_forward_core.3} parent=0 // pred_check_branch
    %8 = sbr.rel (0) target = $region5
  $region4: #{_my_model_forward_core.3} parent=0 // pred_region
    _
  $region5: #{_my_model_forward_core.3} parent=0 // pred_fallthru
    _
  // Predicated region
  $region6: #{_my_model_forward_core.3} parent=0 // pred_check
    _
  $region7: #{_my_model_forward_core.3} parent=0 // pred_check_branch
    %10 = sbr.rel (0) target = $region9
  $region8: #{_my_model_forward_core.3} parent=0 // pred_region
    _
  $region9: #{_my_model_forward_core.3} parent=0 // pred_fallthru
    _
  %v11 = vld [vmem:[%s0] sm:$0xff]
  %v12 = vld [vmem:[%s0 + $0x8] sm:$0xff]
  %v13 = vld [vmem:[%s0 + $0x10] sm:$0xff]
  %v14 = vld [vmem:[%s0 + $0x18] sm:$0xff]
  %v15 = vld [vmem:[%s0 + $0x20] sm:$0xff]
  %v16 = vld [vmem:[%s1] sm:$0xff]
  %v17 = vld [vmem:[%s1 + $0x8] sm:$0xff]
  %v18 = vld [vmem:[%s1 + $0x10] sm:$0xff]
  %v19 = vld [vmem:[%s1 + $0x18] sm:$0xff]
  %v20 = vld [vmem:[%s1 + $0x20] sm:$0xff]
  %v21 = vmul.f32 %v11, %v16
  %v22 = vmul.f32 %v12, %v17
  %v23 = vmul.f32 %v13, %v18
  %v24 = vmul.f32 %v14, %v19
  %v25 = vmul.f32 %v15, %v20
  %vm26 = vcmask 261120
  %v27 = vsel %vm26, %v21, 0.0
  %28 = vadd.xlane.f32.xlu0 %v27
  %v29 = vpop.xlane.xlu0 %28
  %v30 = vsel %vm26, %v22, 0.0
  %31 = vadd.xlane.f32.xlu0 %v30
  %v32 = vpop.xlane.xlu0 %31
  %v33 = vsel %vm26, %v23, 0.0
  %34 = vadd.xlane.f32.xlu0 %v33
  %v35 = vpop.xlane.xlu0 %34
  %v36 = vsel %vm26, %v24, 0.0
  %37 = vadd.xlane.f32.xlu0 %v36
  %v38 = vpop.xlane.xlu0 %37
  %v39 = vsel %vm26, %v25, 0.0
  %40 = vadd.xlane.f32.xlu0 %v39
  %v41 = vpop.xlane.xlu0 %40
  %v47 = vlaneseq
  %v48 = vand.u32 %v47, 127
  %v49 = vperm.slane %v29, %v48
  %v50 = vadd.s32 %v48, 4294967288
  %v51 = vperm.slane %v32, %v50
  %vm52 = vcmask 130112
  %v53 = vsel %vm52, %v51, %v49
  %v54 = vadd.s32 %v48, 4294967280
  %v55 = vperm.slane %v35, %v54
  %vm56 = vcmask 195712
  %v57 = vsel %vm56, %v55, %v53
  %v58 = vadd.s32 %v48, 4294967272
  %v59 = vperm.slane %v38, %v58
  %vm60 = vcmask 261312
  %v61 = vsel %vm60, %v59, %v57
  %v62 = vadd.s32 %v48, 4294967264
  %v63 = vperm.slane %v41, %v62
  %vm64 = vcmask 326912
  %v65 = vsel %vm64, %v63, %v61
  %vm67 = vcmask 319488
  %68 = vst.msk [vmem:[%s2] sm:$0x1] %vm67, %v65
  // Predicated region
  $region10: #{_my_model_forward_core.3} parent=0 // pred_check
    _
  $region11: #{_my_model_forward_core.3} parent=0 // pred_check_branch
    %70 = sbr.rel (0) target = $region13
  $region12: #{_my_model_forward_core.3} parent=0 // pred_region
    _
  $region13: #{_my_model_forward_core.3} parent=0 // pred_fallthru
    _
  // Predicated region
  $region14: #{_my_model_forward_core.3} parent=0 // pred_check
    _
  $region15: #{_my_model_forward_core.3} parent=0 // pred_check_branch
    %72 = sbr.rel (0) target = $region17
  $region16: #{_my_model_forward_core.3} parent=0 // pred_region
    _
  $region17: #{_my_model_forward_core.3} parent=0 // pred_fallthru
    _

// kernel: _my_model_forward_core.4
$region0: #{_my_model_forward_core.4}
  #allocation0 [shape = 'u32[]', space=smem, size = 0x4, offset = 0x4, fixed_abs, tag = 'smem constant byte address 0x4 - core index']
  #allocation1 [shape = 'u32[72,128]{1,0:T(1,128)}', space=vmem, size = 0x9000, scoped, tag = 'internal scratch']
  %s0 = inlined_call_operand.vmem [shape: bf16[128,128], index: 0, kind: input, shape index: {}]
  %s1 = inlined_call_operand.vmem [shape: bf16[128,128], index: 1, kind: input, shape index: {}]
  %s2 = inlined_call_operand.vmem [shape: bf16[128,128], index: 2, kind: output, shape index: {}]
  %s3 = sld [smem:[#allocation0]]
  $region18: #{_my_model_forward_core.4} parent=0
    _
  %s5 = ssub.s32 1, %s3
  %s6 = scalar_select 0, %s5, %s3
  // Predicated region
  $region2: #{_my_model_forward_core.4} parent=0 // pred_check
    _
  $region3: #{_my_model_forward_core.4} parent=0 // pred_check_branch
    %8 = sbr.rel (0) target = $region5
  $region4: #{_my_model_forward_core.4} parent=0 // pred_region
    _
  $region5: #{_my_model_forward_core.4} parent=0 // pred_fallthru
    _
  // Predicated region
  $region6: #{_my_model_forward_core.4} parent=0 // pred_check
    _
  $region7: #{_my_model_forward_core.4} parent=0 // pred_check_branch
    %10 = sbr.rel (0) target = $region9
  $region8: #{_my_model_forward_core.4} parent=0 // pred_region
    _
  $region9: #{_my_model_forward_core.4} parent=0 // pred_fallthru
    _
  %v11 = vld [vmem:[%s0] sm:$0xf]
  %v12 = vld [vmem:[%s0 + $0x4] sm:$0xf]
  %v13 = vld [vmem:[%s0 + $0x8] sm:$0xf]
  %v14 = vld [vmem:[%s0 + $0xc] sm:$0xf]
  %v15 = vld [vmem:[%s0 + $0x10] sm:$0xf]
  %v16 = vld [vmem:[%s0 + $0x14] sm:$0xf]
  %v17 = vld [vmem:[%s0 + $0x18] sm:$0xf]
  %v18 = vld [vmem:[%s0 + $0x1c] sm:$0xf]
  %v19 = vld [vmem:[%s0 + $0x20] sm:$0xf]
  %v20 = vld [vmem:[%s0 + $0x24] sm:$0xf]
  %v21 = vld [vmem:[%s0 + $0x28] sm:$0xf]
  %v22 = vld [vmem:[%s0 + $0x2c] sm:$0xf]
  %v23 = vld [vmem:[%s0 + $0x30] sm:$0xf]
  %v24 = vld [vmem:[%s0 + $0x34] sm:$0xf]
  %v25 = vld [vmem:[%s0 + $0x38] sm:$0xf]
  %v26 = vld [vmem:[%s0 + $0x3c] sm:$0xf]
  %v27 = vld [vmem:[%s1] sm:$0xf]
  %v28 = vld [vmem:[%s1 + $0x4] sm:$0xf]
  %v29 = vld [vmem:[%s1 + $0x8] sm:$0xf]
  %v30 = vld [vmem:[%s1 + $0xc] sm:$0xf]
  %v31 = vld [vmem:[%s1 + $0x10] sm:$0xf]
  %v32 = vld [vmem:[%s1 + $0x14] sm:$0xf]
  %v33 = vld [vmem:[%s1 + $0x18] sm:$0xf]
  %v34 = vld [vmem:[%s1 + $0x1c] sm:$0xf]
  %v35 = vld [vmem:[%s1 + $0x20] sm:$0xf]
  %v36 = vld [vmem:[%s1 + $0x24] sm:$0xf]
  %v37 = vld [vmem:[%s1 + $0x28] sm:$0xf]
  %v38 = vld [vmem:[%s1 + $0x2c] sm:$0xf]
  %v39 = vld [vmem:[%s1 + $0x30] sm:$0xf]
  %v40 = vld [vmem:[%s1 + $0x34] sm:$0xf]
  %v41 = vld [vmem:[%s1 + $0x38] sm:$0xf]
  %v42 = vld [vmem:[%s1 + $0x3c] sm:$0xf]
  %v59 = vunpack.c.l.b16 %v11
  %v60 = vunpack.c.l.b16 %v12
  %v61 = vunpack.c.l.b16 %v13
  %v62 = vunpack.c.l.b16 %v14
  %v63 = vunpack.c.l.b16 %v15
  %v64 = vunpack.c.l.b16 %v16
  %v65 = vunpack.c.l.b16 %v17
  %v66 = vunpack.c.l.b16 %v18
  %v67 = vunpack.c.l.b16 %v19
  %v68 = vunpack.c.l.b16 %v20
  %v69 = vunpack.c.l.b16 %v21
  %v70 = vunpack.c.l.b16 %v22
  %v71 = vunpack.c.l.b16 %v23
  %v72 = vunpack.c.l.b16 %v24
  %v73 = vunpack.c.l.b16 %v25
  %v74 = vunpack.c.l.b16 %v26
  %v75 = vpack.c.b16 %v60, %v59
  %v76 = vpack.c.b16 %v62, %v61
  %v77 = vpack.c.b16 %v64, %v63
  %v78 = vpack.c.b16 %v66, %v65
  %v79 = vpack.c.b16 %v68, %v67
  %v80 = vpack.c.b16 %v70, %v69
  %v81 = vpack.c.b16 %v72, %v71
  %v82 = vpack.c.b16 %v74, %v73
  %v107 = vunpack.c.l.b16 %v27
  %v108 = vunpack.c.l.b16 %v28
  %v109 = vunpack.c.l.b16 %v29
  %v110 = vunpack.c.l.b16 %v30
  %v111 = vunpack.c.l.b16 %v31
  %v112 = vunpack.c.l.b16 %v32
  %v113 = vunpack.c.l.b16 %v33
  %v114 = vunpack.c.l.b16 %v34
  %v115 = vunpack.c.l.b16 %v35
  %v116 = vunpack.c.l.b16 %v36
  %v117 = vunpack.c.l.b16 %v37
  %v118 = vunpack.c.l.b16 %v38
  %v119 = vunpack.c.l.b16 %v39
  %v120 = vunpack.c.l.b16 %v40
  %v121 = vunpack.c.l.b16 %v41
  %v122 = vunpack.c.l.b16 %v42
  %v123 = vpack.c.b16 %v108, %v107
  %v124 = vpack.c.b16 %v110, %v109
  %v125 = vpack.c.b16 %v112, %v111
  %v126 = vpack.c.b16 %v114, %v113
  %v127 = vpack.c.b16 %v116, %v115
  %v128 = vpack.c.b16 %v118, %v117
  %v129 = vpack.c.b16 %v120, %v119
  %v130 = vpack.c.b16 %v122, %v121
  %139 = vmatpush.bf16.msra.mxu0 %v130
  %140 = vmatpush.bf16.msra.mxu0 %v129
  %141 = vmatpush.bf16.msra.mxu0 %v128
  %142 = vmatpush.bf16.msra.mxu0 %v127
  %143 = vmatpush.bf16.msra.mxu0 %v126
  %144 = vmatpush.bf16.msra.mxu0 %v125
  %145 = vmatpush.bf16.msra.mxu0 %v124
  %146 = vmatpush.bf16.msra.mxu0 %v123
  %147 = vmatmul.bf16.gmra.mxu0 %v75
  %v148 = vpop.f32.mrf.mxu0
  %v149 = vadd.f32 0.0, %v148
  %v150 = vpop.f32.mrf.mxu0
  %v151 = vadd.f32 0.0, %v150
  %152 = vmatmul.bf16.gmra.mxu0 %v76
  %v153 = vpop.f32.mrf.mxu0
  %v154 = vadd.f32 0.0, %v153
  %v155 = vpop.f32.mrf.mxu0
  %v156 = vadd.f32 0.0, %v155
  %157 = vmatmul.bf16.gmra.mxu0 %v77
  %v158 = vpop.f32.mrf.mxu0
  %v159 = vadd.f32 0.0, %v158
  %v160 = vpop.f32.mrf.mxu0
  %v161 = vadd.f32 0.0, %v160
  %162 = vmatmul.bf16.gmra.mxu0 %v78
  %v163 = vpop.f32.mrf.mxu0
  %v164 = vadd.f32 0.0, %v163
  %v165 = vpop.f32.mrf.mxu0
  %v166 = vadd.f32 0.0, %v165
  %167 = vmatmul.bf16.gmra.mxu0 %v79
  %v168 = vpop.f32.mrf.mxu0
  %v169 = vadd.f32 0.0, %v168
  %v170 = vpop.f32.mrf.mxu0
  %v171 = vadd.f32 0.0, %v170
  %172 = vmatmul.bf16.gmra.mxu0 %v80
  %v173 = vpop.f32.mrf.mxu0
  %v174 = vadd.f32 0.0, %v173
  %v175 = vpop.f32.mrf.mxu0
  %v176 = vadd.f32 0.0, %v175
  %177 = vmatmul.bf16.gmra.mxu0 %v81
  %v178 = vpop.f32.mrf.mxu0
  %v179 = vadd.f32 0.0, %v178
  %v180 = vpop.f32.mrf.mxu0
  %v181 = vadd.f32 0.0, %v180
  %182 = vmatmul.bf16.gmra.mxu0 %v82
  %v183 = vpop.f32.mrf.mxu0
  %v184 = vadd.f32 0.0, %v183
  %v185 = vpop.f32.mrf.mxu0
  %v186 = vadd.f32 0.0, %v185
  %187 = vdwg.mxu0
  %v188 = vpack.c.bf16 %v149, %v149
  %v189 = vpack.c.bf16 %v151, %v151
  %v190 = vpack.c.bf16 %v154, %v154
  %v191 = vpack.c.bf16 %v156, %v156
  %v192 = vpack.c.bf16 %v159, %v159
  %v193 = vpack.c.bf16 %v161, %v161
  %v194 = vpack.c.bf16 %v164, %v164
  %v195 = vpack.c.bf16 %v166, %v166
  %v196 = vpack.c.bf16 %v169, %v169
  %v197 = vpack.c.bf16 %v171, %v171
  %v198 = vpack.c.bf16 %v174, %v174
  %v199 = vpack.c.bf16 %v176, %v176
  %v200 = vpack.c.bf16 %v179, %v179
  %v201 = vpack.c.bf16 %v181, %v181
  %v202 = vpack.c.bf16 %v184, %v184
  %v203 = vpack.c.bf16 %v186, %v186
  %204 = vst [vmem:[%s2] sm:$0xf] %v188
  %205 = vst [vmem:[%s2 + $0x4] sm:$0xf] %v189
  %206 = vst [vmem:[%s2 + $0x8] sm:$0xf] %v190
  %207 = vst [vmem:[%s2 + $0xc] sm:$0xf] %v191
  %208 = vst [vmem:[%s2 + $0x10] sm:$0xf] %v192
  %209 = vst [vmem:[%s2 + $0x14] sm:$0xf] %v193
  %210 = vst [vmem:[%s2 + $0x18] sm:$0xf] %v194
  %211 = vst [vmem:[%s2 + $0x1c] sm:$0xf] %v195
  %212 = vst [vmem:[%s2 + $0x20] sm:$0xf] %v196
  %213 = vst [vmem:[%s2 + $0x24] sm:$0xf] %v197
  %214 = vst [vmem:[%s2 + $0x28] sm:$0xf] %v198
  %215 = vst [vmem:[%s2 + $0x2c] sm:$0xf] %v199
  %216 = vst [vmem:[%s2 + $0x30] sm:$0xf] %v200
  %217 = vst [vmem:[%s2 + $0x34] sm:$0xf] %v201
  %218 = vst [vmem:[%s2 + $0x38] sm:$0xf] %v202
  %219 = vst [vmem:[%s2 + $0x3c] sm:$0xf] %v203
  // Predicated region
  $region10: #{_my_model_forward_core.4} parent=0 // pred_check
    _
  $region11: #{_my_model_forward_core.4} parent=0 // pred_check_branch
    %221 = sbr.rel (0) target = $region13
  $region12: #{_my_model_forward_core.4} parent=0 // pred_region
    _
  $region13: #{_my_model_forward_core.4} parent=0 // pred_fallthru
    _
  // Predicated region
  $region14: #{_my_model_forward_core.4} parent=0 // pred_check
    _
  $region15: #{_my_model_forward_core.4} parent=0 // pred_check_branch
    %223 = sbr.rel (0) target = $region17
  $region16: #{_my_model_forward_core.4} parent=0 // pred_region
    _
  $region17: #{_my_model_forward_core.4} parent=0 // pred_fallthru
    _

// kernel: _my_model_forward_core.5
$region0: #{_my_model_forward_core.5}
  #allocation0 [shape = 'u32[]', space=smem, size = 0x4, offset = 0x4, fixed_abs, tag = 'smem constant byte address 0x4 - core index']
  #allocation1 [shape = 'u32[72,128]{1,0:T(1,128)}', space=vmem, size = 0x9000, scoped, tag = 'internal scratch']
  #allocation2 [shape = 'f32[128,128]{1,0:T(8,128)}', space=vmem, size = 0x10000, scoped, tag = 'scratch operand']
  %s0 = inlined_call_operand.vmem [shape: bf16[128,128], index: 0, kind: input, shape index: {}]
  %s1 = inlined_call_operand.vmem [shape: bf16[128,128], index: 1, kind: input, shape index: {}]
  %s2 = inlined_call_operand.vmem [shape: f32[1,128], index: 2, kind: input, shape index: {}]
  %s3 = inlined_call_operand.vmem [shape: f32[128,128], index: 3, kind: output, shape index: {}]
  %s4 = sld [smem:[#allocation0]]
  $region30: #{_my_model_forward_core.5} parent=0
    _
  %s6 = ssub.s32 1, %s4
  %s7 = scalar_select 0, %s6, %s4
  // Predicated region
  $region2: #{_my_model_forward_core.5} parent=0 // pred_check
    _
  $region3: #{_my_model_forward_core.5} parent=0 // pred_check_branch
    %9 = sbr.rel (0) target = $region5
  $region4: #{_my_model_forward_core.5} parent=0 // pred_region
    _
  $region5: #{_my_model_forward_core.5} parent=0 // pred_fallthru
    _
  // Predicated region
  $region6: #{_my_model_forward_core.5} parent=0 // pred_check
    _
  $region7: #{_my_model_forward_core.5} parent=0 // pred_check_branch
    %11 = sbr.rel (0) target = $region9
  $region8: #{_my_model_forward_core.5} parent=0 // pred_region
    _
  $region9: #{_my_model_forward_core.5} parent=0 // pred_fallthru
    _
  // Predicated region
  $region10: #{_my_model_forward_core.5} parent=0 // pred_check
    _
  $region11: #{_my_model_forward_core.5} parent=0 // pred_check_branch
    %13 = sbr.rel (0) target = $region13
  $region12: #{_my_model_forward_core.5} parent=0 // pred_region
    _
  $region13: #{_my_model_forward_core.5} parent=0 // pred_fallthru
    _
  %p14 = scmp.eq.s32.totalorder 0, 0
  // Predicated region
  $region14: #{_my_model_forward_core.5} parent=0 // pred_check
    %p15 = pneg %p14
  $region15: #{_my_model_forward_core.5} parent=0 // pred_check_branch
    %17 = sbr.rel (%p15) target = $region17
  $region16: #{_my_model_forward_core.5} parent=0 // pred_region
    %18 = vst [vmem:[#allocation2] sm:$0xff] 0.0
    %19 = vst [vmem:[#allocation2 + $0x8] sm:$0xff] 0.0
    %20 = vst [vmem:[#allocation2 + $0x10] sm:$0xff] 0.0
    %21 = vst [vmem:[#allocation2 + $0x18] sm:$0xff] 0.0
    %22 = vst [vmem:[#allocation2 + $0x20] sm:$0xff] 0.0
    %23 = vst [vmem:[#allocation2 + $0x28] sm:$0xff] 0.0
    %24 = vst [vmem:[#allocation2 + $0x30] sm:$0xff] 0.0
    %25 = vst [vmem:[#allocation2 + $0x38] sm:$0xff] 0.0
    %26 = vst [vmem:[#allocation2 + $0x40] sm:$0xff] 0.0
    %27 = vst [vmem:[#allocation2 + $0x48] sm:$0xff] 0.0
    %28 = vst [vmem:[#allocation2 + $0x50] sm:$0xff] 0.0
    %29 = vst [vmem:[#allocation2 + $0x58] sm:$0xff] 0.0
    %30 = vst [vmem:[#allocation2 + $0x60] sm:$0xff] 0.0
    %31 = vst [vmem:[#allocation2 + $0x68] sm:$0xff] 0.0
    %32 = vst [vmem:[#allocation2 + $0x70] sm:$0xff] 0.0
    %33 = vst [vmem:[#allocation2 + $0x78] sm:$0xff] 0.0
  $region17: #{_my_model_forward_core.5} parent=0 // pred_fallthru
    _
  %s34 = smul.u32 0, 128
  %v35 = vld [vmem:[#allocation2] sm:$0xff]
  %v36 = vld [vmem:[#allocation2 + $0x8] sm:$0xff]
  %v37 = vld [vmem:[#allocation2 + $0x10] sm:$0xff]
  %v38 = vld [vmem:[#allocation2 + $0x18] sm:$0xff]
  %v39 = vld [vmem:[#allocation2 + $0x20] sm:$0xff]
  %v40 = vld [vmem:[#allocation2 + $0x28] sm:$0xff]
  %v41 = vld [vmem:[#allocation2 + $0x30] sm:$0xff]
  %v42 = vld [vmem:[#allocation2 + $0x38] sm:$0xff]
  %v43 = vld [vmem:[#allocation2 + $0x40] sm:$0xff]
  %v44 = vld [vmem:[#allocation2 + $0x48] sm:$0xff]
  %v45 = vld [vmem:[#allocation2 + $0x50] sm:$0xff]
  %v46 = vld [vmem:[#allocation2 + $0x58] sm:$0xff]
  %v47 = vld [vmem:[#allocation2 + $0x60] sm:$0xff]
  %v48 = vld [vmem:[#allocation2 + $0x68] sm:$0xff]
  %v49 = vld [vmem:[#allocation2 + $0x70] sm:$0xff]
  %v50 = vld [vmem:[#allocation2 + $0x78] sm:$0xff]
  %v51 = vld [vmem:[%s0] sm:$0xf]
  %v52 = vld [vmem:[%s0 + $0x4] sm:$0xf]
  %v53 = vld [vmem:[%s0 + $0x8] sm:$0xf]
  %v54 = vld [vmem:[%s0 + $0xc] sm:$0xf]
  %v55 = vld [vmem:[%s0 + $0x10] sm:$0xf]
  %v56 = vld [vmem:[%s0 + $0x14] sm:$0xf]
  %v57 = vld [vmem:[%s0 + $0x18] sm:$0xf]
  %v58 = vld [vmem:[%s0 + $0x1c] sm:$0xf]
  %v59 = vld [vmem:[%s0 + $0x20] sm:$0xf]
  %v60 = vld [vmem:[%s0 + $0x24] sm:$0xf]
  %v61 = vld [vmem:[%s0 + $0x28] sm:$0xf]
  %v62 = vld [vmem:[%s0 + $0x2c] sm:$0xf]
  %v63 = vld [vmem:[%s0 + $0x30] sm:$0xf]
  %v64 = vld [vmem:[%s0 + $0x34] sm:$0xf]
  %v65 = vld [vmem:[%s0 + $0x38] sm:$0xf]
  %v66 = vld [vmem:[%s0 + $0x3c] sm:$0xf]
  %s67 = sshra.s32 %s34, 3
  %s68 = sand.u32 %s34, 7
  %s69 = smul.addr %s67, 4
  %s70 = scalar_lea.vmem %s1, %s69
  %v71 = vld [vmem:[%s70] sm:$0xf]
  %v72 = vld [vmem:[%s70 + $0x4] sm:$0xf]
  %v73 = vld [vmem:[%s70 + $0x8] sm:$0xf]
  %v74 = vld [vmem:[%s70 + $0xc] sm:$0xf]
  %v75 = vld [vmem:[%s70 + $0x10] sm:$0xf]
  %v76 = vld [vmem:[%s70 + $0x14] sm:$0xf]
  %v77 = vld [vmem:[%s70 + $0x18] sm:$0xf]
  %v78 = vld [vmem:[%s70 + $0x1c] sm:$0xf]
  %v79 = vld [vmem:[%s70 + $0x20] sm:$0xf]
  %v80 = vld [vmem:[%s70 + $0x24] sm:$0xf]
  %v81 = vld [vmem:[%s70 + $0x28] sm:$0xf]
  %v82 = vld [vmem:[%s70 + $0x2c] sm:$0xf]
  %v83 = vld [vmem:[%s70 + $0x30] sm:$0xf]
  %v84 = vld [vmem:[%s70 + $0x34] sm:$0xf]
  %v85 = vld [vmem:[%s70 + $0x38] sm:$0xf]
  %v86 = vld [vmem:[%s70 + $0x3c] sm:$0xf]
  %v103 = vunpack.c.l.b16 %v51
  %v104 = vunpack.c.l.b16 %v52
  %v105 = vunpack.c.l.b16 %v53
  %v106 = vunpack.c.l.b16 %v54
  %v107 = vunpack.c.l.b16 %v55
  %v108 = vunpack.c.l.b16 %v56
  %v109 = vunpack.c.l.b16 %v57
  %v110 = vunpack.c.l.b16 %v58
  %v111 = vunpack.c.l.b16 %v59
  %v112 = vunpack.c.l.b16 %v60
  %v113 = vunpack.c.l.b16 %v61
  %v114 = vunpack.c.l.b16 %v62
  %v115 = vunpack.c.l.b16 %v63
  %v116 = vunpack.c.l.b16 %v64
  %v117 = vunpack.c.l.b16 %v65
  %v118 = vunpack.c.l.b16 %v66
  %v119 = vpack.c.b16 %v104, %v103
  %v120 = vpack.c.b16 %v106, %v105
  %v121 = vpack.c.b16 %v108, %v107
  %v122 = vpack.c.b16 %v110, %v109
  %v123 = vpack.c.b16 %v112, %v111
  %v124 = vpack.c.b16 %v114, %v113
  %v125 = vpack.c.b16 %v116, %v115
  %v126 = vpack.c.b16 %v118, %v117
  %v151 = vunpack.c.l.b16 %v71
  %v152 = vunpack.c.l.b16 %v72
  %v153 = vunpack.c.l.b16 %v73
  %v154 = vunpack.c.l.b16 %v74
  %v155 = vunpack.c.l.b16 %v75
  %v156 = vunpack.c.l.b16 %v76
  %v157 = vunpack.c.l.b16 %v77
  %v158 = vunpack.c.l.b16 %v78
  %v159 = vunpack.c.l.b16 %v79
  %v160 = vunpack.c.l.b16 %v80
  %v161 = vunpack.c.l.b16 %v81
  %v162 = vunpack.c.l.b16 %v82
  %v163 = vunpack.c.l.b16 %v83
  %v164 = vunpack.c.l.b16 %v84
  %v165 = vunpack.c.l.b16 %v85
  %v166 = vunpack.c.l.b16 %v86
  %v167 = vpack.c.b16 %v152, %v151
  %v168 = vpack.c.b16 %v154, %v153
  %v169 = vpack.c.b16 %v156, %v155
  %v170 = vpack.c.b16 %v158, %v157
  %v171 = vpack.c.b16 %v160, %v159
  %v172 = vpack.c.b16 %v162, %v161
  %v173 = vpack.c.b16 %v164, %v163
  %v174 = vpack.c.b16 %v166, %v165
  %183 = vmatpush.bf16.msra.mxu0 %v174
  %184 = vmatpush.bf16.msra.mxu0 %v173
  %185 = vmatpush.bf16.msra.mxu0 %v172
  %186 = vmatpush.bf16.msra.mxu0 %v171
  %187 = vmatpush.bf16.msra.mxu0 %v170
  %188 = vmatpush.bf16.msra.mxu0 %v169
  %189 = vmatpush.bf16.msra.mxu0 %v168
  %190 = vmatpush.bf16.msra.mxu0 %v167
  %191 = vmatmul.bf16.gmra.mxu0 %v119
  %v192 = vpop.f32.mrf.mxu0
  %v193 = vadd.f32 0.0, %v192
  %v194 = vpop.f32.mrf.mxu0
  %v195 = vadd.f32 0.0, %v194
  %196 = vmatmul.bf16.gmra.mxu0 %v120
  %v197 = vpop.f32.mrf.mxu0
  %v198 = vadd.f32 0.0, %v197
  %v199 = vpop.f32.mrf.mxu0
  %v200 = vadd.f32 0.0, %v199
  %201 = vmatmul.bf16.gmra.mxu0 %v121
  %v202 = vpop.f32.mrf.mxu0
  %v203 = vadd.f32 0.0, %v202
  %v204 = vpop.f32.mrf.mxu0
  %v205 = vadd.f32 0.0, %v204
  %206 = vmatmul.bf16.gmra.mxu0 %v122
  %v207 = vpop.f32.mrf.mxu0
  %v208 = vadd.f32 0.0, %v207
  %v209 = vpop.f32.mrf.mxu0
  %v210 = vadd.f32 0.0, %v209
  %211 = vmatmul.bf16.gmra.mxu0 %v123
  %v212 = vpop.f32.mrf.mxu0
  %v213 = vadd.f32 0.0, %v212
  %v214 = vpop.f32.mrf.mxu0
  %v215 = vadd.f32 0.0, %v214
  %216 = vmatmul.bf16.gmra.mxu0 %v124
  %v217 = vpop.f32.mrf.mxu0
  %v218 = vadd.f32 0.0, %v217
  %v219 = vpop.f32.mrf.mxu0
  %v220 = vadd.f32 0.0, %v219
  %221 = vmatmul.bf16.gmra.mxu0 %v125
  %v222 = vpop.f32.mrf.mxu0
  %v223 = vadd.f32 0.0, %v222
  %v224 = vpop.f32.mrf.mxu0
  %v225 = vadd.f32 0.0, %v224
  %226 = vmatmul.bf16.gmra.mxu0 %v126
  %v227 = vpop.f32.mrf.mxu0
  %v228 = vadd.f32 0.0, %v227
  %v229 = vpop.f32.mrf.mxu0
  %v230 = vadd.f32 0.0, %v229
  %231 = vdwg.mxu0
  %v232 = vadd.f32 %v35, %v193
  %v233 = vadd.f32 %v36, %v195
  %v234 = vadd.f32 %v37, %v198
  %v235 = vadd.f32 %v38, %v200
  %v236 = vadd.f32 %v39, %v203
  %v237 = vadd.f32 %v40, %v205
  %v238 = vadd.f32 %v41, %v208
  %v239 = vadd.f32 %v42, %v210
  %v240 = vadd.f32 %v43, %v213
  %v241 = vadd.f32 %v44, %v215
  %v242 = vadd.f32 %v45, %v218
  %v243 = vadd.f32 %v46, %v220
  %v244 = vadd.f32 %v47, %v223
  %v245 = vadd.f32 %v48, %v225
  %v246 = vadd.f32 %v49, %v228
  %v247 = vadd.f32 %v50, %v230
  %248 = vst [vmem:[#allocation2] sm:$0xff] %v232
  %249 = vst [vmem:[#allocation2 + $0x8] sm:$0xff] %v233
  %250 = vst [vmem:[#allocation2 + $0x10] sm:$0xff] %v234
  %251 = vst [vmem:[#allocation2 + $0x18] sm:$0xff] %v235
  %252 = vst [vmem:[#allocation2 + $0x20] sm:$0xff] %v236
  %253 = vst [vmem:[#allocation2 + $0x28] sm:$0xff] %v237
  %254 = vst [vmem:[#allocation2 + $0x30] sm:$0xff] %v238
  %255 = vst [vmem:[#allocation2 + $0x38] sm:$0xff] %v239
  %256 = vst [vmem:[#allocation2 + $0x40] sm:$0xff] %v240
  %257 = vst [vmem:[#allocation2 + $0x48] sm:$0xff] %v241
  %258 = vst [vmem:[#allocation2 + $0x50] sm:$0xff] %v242
  %259 = vst [vmem:[#allocation2 + $0x58] sm:$0xff] %v243
  %260 = vst [vmem:[#allocation2 + $0x60] sm:$0xff] %v244
  %261 = vst [vmem:[#allocation2 + $0x68] sm:$0xff] %v245
  %262 = vst [vmem:[#allocation2 + $0x70] sm:$0xff] %v246
  %263 = vst [vmem:[#allocation2 + $0x78] sm:$0xff] %v247
  // Predicated region
  $region18: #{_my_model_forward_core.5} parent=0 // pred_check
    %p264 = pneg %p14
  $region19: #{_my_model_forward_core.5} parent=0 // pred_check_branch
    %266 = sbr.rel (%p264) target = $region21
  $region20: #{_my_model_forward_core.5} parent=0 // pred_region
    %v267 = vld [vmem:[#allocation2] sm:$0xff]
    %v268 = vld [vmem:[#allocation2 + $0x8] sm:$0xff]
    %v269 = vld [vmem:[#allocation2 + $0x10] sm:$0xff]
    %v270 = vld [vmem:[#allocation2 + $0x18] sm:$0xff]
    %v271 = vld [vmem:[#allocation2 + $0x20] sm:$0xff]
    %v272 = vld [vmem:[#allocation2 + $0x28] sm:$0xff]
    %v273 = vld [vmem:[#allocation2 + $0x30] sm:$0xff]
    %v274 = vld [vmem:[#allocation2 + $0x38] sm:$0xff]
    %v275 = vld [vmem:[#allocation2 + $0x40] sm:$0xff]
    %v276 = vld [vmem:[#allocation2 + $0x48] sm:$0xff]
    %v277 = vld [vmem:[#allocation2 + $0x50] sm:$0xff]
    %v278 = vld [vmem:[#allocation2 + $0x58] sm:$0xff]
    %v279 = vld [vmem:[#allocation2 + $0x60] sm:$0xff]
    %v280 = vld [vmem:[#allocation2 + $0x68] sm:$0xff]
    %v281 = vld [vmem:[#allocation2 + $0x70] sm:$0xff]
    %v282 = vld [vmem:[#allocation2 + $0x78] sm:$0xff]
    %v283 = vld [vmem:[%s2] sm:$0x1]
    %v285 = vperm.slane %v283, 0
    %v287 = vadd.f32 %v267, %v285
    %v288 = vadd.f32 %v268, %v285
    %v289 = vadd.f32 %v269, %v285
    %v290 = vadd.f32 %v270, %v285
    %v291 = vadd.f32 %v271, %v285
    %v292 = vadd.f32 %v272, %v285
    %v293 = vadd.f32 %v273, %v285
    %v294 = vadd.f32 %v274, %v285
    %v295 = vadd.f32 %v275, %v285
    %v296 = vadd.f32 %v276, %v285
    %v297 = vadd.f32 %v277, %v285
    %v298 = vadd.f32 %v278, %v285
    %v299 = vadd.f32 %v279, %v285
    %v300 = vadd.f32 %v280, %v285
    %v301 = vadd.f32 %v281, %v285
    %v302 = vadd.f32 %v282, %v285
    %303 = vst [vmem:[%s3] sm:$0xff] %v287
    %304 = vst [vmem:[%s3 + $0x8] sm:$0xff] %v288
    %305 = vst [vmem:[%s3 + $0x10] sm:$0xff] %v289
    %306 = vst [vmem:[%s3 + $0x18] sm:$0xff] %v290
    %307 = vst [vmem:[%s3 + $0x20] sm:$0xff] %v291
    %308 = vst [vmem:[%s3 + $0x28] sm:$0xff] %v292
    %309 = vst [vmem:[%s3 + $0x30] sm:$0xff] %v293
    %310 = vst [vmem:[%s3 + $0x38] sm:$0xff] %v294
    %311 = vst [vmem:[%s3 + $0x40] sm:$0xff] %v295
    %312 = vst [vmem:[%s3 + $0x48] sm:$0xff] %v296
    %313 = vst [vmem:[%s3 + $0x50] sm:$0xff] %v297
    %314 = vst [vmem:[%s3 + $0x58] sm:$0xff] %v298
    %315 = vst [vmem:[%s3 + $0x60] sm:$0xff] %v299
    %316 = vst [vmem:[%s3 + $0x68] sm:$0xff] %v300
    %317 = vst [vmem:[%s3 + $0x70] sm:$0xff] %v301
    %318 = vst [vmem:[%s3 + $0x78] sm:$0xff] %v302
  $region21: #{_my_model_forward_core.5} parent=0 // pred_fallthru
    _
  // Predicated region
  $region22: #{_my_model_forward_core.5} parent=0 // pred_check
    _
  $region23: #{_my_model_forward_core.5} parent=0 // pred_check_branch
    %320 = sbr.rel (0) target = $region25
  $region24: #{_my_model_forward_core.5} parent=0 // pred_region
    _
  $region25: #{_my_model_forward_core.5} parent=0 // pred_fallthru
    _
  // Predicated region
  $region26: #{_my_model_forward_core.5} parent=0 // pred_check
    _
  $region27: #{_my_model_forward_core.5} parent=0 // pred_check_branch
    %322 = sbr.rel (0) target = $region29
  $region28: #{_my_model_forward_core.5} parent=0 // pred_region
    _
  $region29: #{_my_model_forward_core.5} parent=0 // pred_fallthru
    _

</llo_original>
